<compile_context>
chip_gen: v7x
topology: tpu7x:2x2x1
jax: 0.10.0
libtpu: 0.0.40
codegen_flags: <defaults>
</compile_context>

<pallas_src>
import jax
import jax.numpy as jnp
from jax import lax
from jax.experimental import pallas as pl
from jax.experimental.pallas import tpu as pltpu


def _round_up(a, b):
    return (a + b - 1) // b * b


def _vmem_capacity_bytes():
    try:
        info = pltpu.get_tpu_info()
        cap = int(getattr(info, "vmem_capacity_bytes", 0) or 0)
        if cap > 0:
            return cap
    except Exception:
        pass
    return 64 * 1024 * 1024  # conservative fallback (v7x per-TC VMEM)


# ----------------------------- kernels ------------------------------------ #

def _make_pool_kernel(pool_axis):
    """x tile is (TN, C, HW) [pool_axis=2, NCHW] or (TN, HW, C) [pool_axis=1, NHWC].

    AdaptiveAvgPool2d((1,1)) == sum over the spatial axis; the 1/(H*W) factor and
    the BN scales are pre-folded into the weights by the wrapper.
    """
    def kernel(x_ref, w0_ref, t0_ref, w1_ref, t1_ref, o_ref):
        pooled = jnp.sum(x_ref[...], axis=pool_axis, dtype=jnp.float32)   # (TN, C)
        h = jnp.dot(pooled.astype(w0_ref.dtype), w0_ref[...],
                    preferred_element_type=jnp.float32)
        h = jnp.maximum(h + t0_ref[...], 0.0)                             # bn0 shift + relu
        out = jnp.dot(h.astype(w1_ref.dtype), w1_ref[...],
                      preferred_element_type=jnp.float32)
        o_ref[...] = (out + t1_ref[...]).astype(o_ref.dtype)              # bn1 shift
    return kernel


def _make_nopool_kernel(in_dim, tk):
    """Flattened-features path; fc0's in_features is tiled over the (last) K grid axis."""
    ragged = (in_dim % tk) != 0

    def kernel(x_ref, w0_ref, t0_ref, w1_ref, t1_ref, o_ref, acc_ref):
        k = pl.program_id(1)

        @pl.when(k == 0)
        def _init():
            acc_ref[...] = jnp.zeros_like(acc_ref)

        xk = x_ref[...]
        if ragged:
            # Last K block reads past in_dim (unspecified data); mask it to zero.
            cols = k * tk + lax.broadcasted_iota(jnp.int32, xk.shape, 1)
            xk = jnp.where(cols < in_dim, xk, jnp.zeros_like(xk))
        acc_ref[...] += jnp.dot(xk.astype(w0_ref.dtype), w0_ref[...],
                                preferred_element_type=jnp.float32)

        @pl.when(k == pl.num_programs(1) - 1)
        def _finish():
            h = jnp.maximum(acc_ref[...] + t0_ref[...], 0.0)
            out = jnp.dot(h.astype(w1_ref.dtype), w1_ref[...],
                          preferred_element_type=jnp.float32)
            o_ref[...] = (out + t1_ref[...]).astype(o_ref.dtype)
    return kernel


# ----------------------------- wrapper ------------------------------------- #

def _fold_bn(dim, bn, eps):
    """bn = None (identity) or dict(gamma, beta, mean, var) -> (scale, shift)."""
    if bn is None:
        return jnp.ones((dim,), jnp.float32), jnp.zeros((dim,), jnp.float32)
    gamma = bn.get("gamma")
    beta = bn.get("beta")
    gamma = jnp.ones((dim,), jnp.float32) if gamma is None else jnp.asarray(gamma, jnp.float32)
    beta = jnp.zeros((dim,), jnp.float32) if beta is None else jnp.asarray(beta, jnp.float32)
    mean = jnp.asarray(bn["mean"], jnp.float32)
    var = jnp.asarray(bn["var"], jnp.float32)
    scale = gamma * lax.rsqrt(var + eps)
    shift = beta - mean * scale
    return scale, shift


def _pick_tn(n, batch_tile, per_row_bytes, resident_bytes, budget, cap):
    if batch_tile is not None:
        tn = int(batch_tile)
    else:
        avail = max(budget - resident_bytes - (2 << 20), 1 << 20)
        tn = int(min(max(avail // (2 * per_row_bytes), 8), 1024))
        if tn < 128 and 2 * 128 * per_row_bytes + resident_bytes <= int(cap * 0.9):
            tn = 128       # >=128-row floor when it physically fits (DMA/MXU knee)
    if n > 256:            # keep >=2 grid steps so a 'parallel' megacore split has work
        tn = min(tn, _round_up((n + 1) // 2, 8))
    if tn >= n:
        return int(n)
    return int(max(8, (tn // 8) * 8))


def nonlinear_neck_simclr(x, w0, w1, bn0, bn1, *, b0=None, b1=None,
                          with_avg_pool=True, channels_last=False, eps=1e-5,
                          weight_dtype=jnp.bfloat16, batch_tile=None, k_tile=None):
    """SimCLR neck forward (num_layers=2).

    x: (N, C, H, W) if not channels_last else (N, H, W, C).  No standalone HBM
       transpose is performed; only free reshapes.
    w0: (in_features, hid)   in_features = C (pooled) or C*H*W (no pool); no bias.
    w1: (hid, out); no bias.
    bn0/bn1: dict(gamma, beta, mean, var) (running stats, inference form) or None.
    """
    if channels_last:
        n, h, w_sp, c = x.shape
    else:
        n, c, h, w_sp = x.shape
    hw = h * w_sp
    in_dim = c if with_avg_pool else c * hw
    hid, out = w0.shape[1], w1.shape[1]
    assert w0.shape[0] == in_dim and w1.shape[0] == hid

    # ---- fold BN (inference form) + optional linear biases into (scale, shift);
    #      fold scale (and the pool's 1/(H*W)) column-wise into the weights.
    s0, t0 = _fold_bn(hid, bn0, eps)
    s1, t1 = _fold_bn(out, bn1, eps)
    if b0 is not None:
        t0 = t0 + jnp.asarray(b0, jnp.float32) * s0
    if b1 is not None:
        t1 = t1 + jnp.asarray(b1, jnp.float32) * s1
    w0f = jnp.asarray(w0, jnp.float32) * s0[None, :]
    w1f = jnp.asarray(w1, jnp.float32) * s1[None, :]
    if with_avg_pool:
        w0f = w0f * (1.0 / hw)

    # ---- zero-pad feature dims to lane-dense multiples of 128; bf16 weights.
    hid_p = _round_up(hid, 128)
    out_p = _round_up(out, 128)
    w_item = jnp.dtype(weight_dtype).itemsize
    x_item = jnp.dtype(x.dtype).itemsize
    t0_p = jnp.zeros((1, hid_p), jnp.float32).at[0, :hid].set(t0)
    t1_p = jnp.zeros((1, out_p), jnp.float32).at[0, :out].set(t1)
    w1_p = jnp.zeros((hid_p, out_p), weight_dtype).at[:hid, :out].set(
        w1f.astype(weight_dtype))

    cap = _vmem_capacity_bytes()
    budget = int(cap * 0.75)   # ~96 MiB on v5e/v6e, ~48 MiB on v7x

    if with_avg_pool:
        if channels_last:
            x_in = x.reshape(n, hw, c)       # free reshape: C on lanes, pool sublanes
            pool_axis = 1
            per_row_x = _round_up(hw, 8) * _round_up(c, 128) * x_item
        else:
            x_in = x.reshape(n, c, hw)       # free reshape: HW on lanes, pool lanes
            pool_axis = 2
            per_row_x = _round_up(c, 8) * _round_up(hw, 128) * x_item
        x_block = (None, hw, c) if channels_last else (None, c, hw)

        w0_p = jnp.zeros((in_dim, hid_p), weight_dtype).at[:, :hid].set(
            w0f.astype(weight_dtype))
        resident = (in_dim * hid_p + hid_p * out_p) * w_item + 8 * (hid_p + out_p) * 4
        per_row_out = out_p * 4
        tn = _pick_tn(n, batch_tile, per_row_x + per_row_out, resident, budget, cap)
        xb = (tn,) + x_block[1:]

        def _call(single_buffer):
            def cspec(shape, imap):
                if single_buffer:
                    return pl.BlockSpec(shape, imap, pipeline_mode=pl.Buffered(1))
                return pl.BlockSpec(shape, imap)
            resident_eff = resident if single_buffer else 2 * resident
            need = 2 * tn * (per_row_x + per_row_out) + resident_eff + (2 << 20)
            vmem_limit = int(min(max(need, 32 << 20), cap))
            const = lambda i: (0, 0)
            in_specs = [
                pl.BlockSpec(xb, lambda i: (i, 0, 0)),
                cspec((in_dim, hid_p), const),
                cspec((1, hid_p), const),
                cspec((hid_p, out_p), const),
                cspec((1, out_p), const),
            ]
            return pl.pallas_call(
                _make_pool_kernel(pool_axis),
                out_shape=jax.ShapeDtypeStruct((n, out_p), jnp.float32),
                grid=(pl.cdiv(n, tn),),
                in_specs=in_specs,
                out_specs=pl.BlockSpec((tn, out_p), lambda i: (i, 0)),
                compiler_params=pltpu.CompilerParams(
                    dimension_semantics=("parallel",),
                    vmem_limit_bytes=vmem_limit),
            )(x_in, w0_p, t0_p, w1_p, t1_p)

        try:
            out_padded = _call(True)
        except Exception:           # pipeline_mode unsupported -> default buffering
            out_padded = _call(False)

    else:
        # NOTE: for channels_last inputs this flattens in (H, W, C) order (the given
        # layout); the PyTorch module flattens its NCHW input in (C, H, W) order.
        x_in = x.reshape(n, in_dim)
        if k_tile is None:
            tk = max(128, ((4 << 20) // max(hid_p * w_item, 1)) // 128 * 128)
        else:
            tk = max(128, _round_up(int(k_tile), 128))
        tk = min(tk, _round_up(in_dim, 128))
        k_steps = pl.cdiv(in_dim, tk)
        w0_p = jnp.zeros((k_steps * tk, hid_p), weight_dtype).at[:in_dim, :hid].set(
            w0f.astype(weight_dtype))

        per_row_x = tk * x_item
        per_row_out = out_p * 4 + hid_p * 4          # out block + f32 accumulator row
        resident = hid_p * out_p * w_item + 8 * (hid_p + out_p) * 4 \
                   + 2 * tk * hid_p * w_item          # K-tiled w0 is double-buffered
        tn = _pick_tn(n, batch_tile, per_row_x + per_row_out, resident, budget, cap)

        def _call(single_buffer):
            def cspec(shape, imap):
                if single_buffer:
                    return pl.BlockSpec(shape, imap, pipeline_mode=pl.Buffered(1))
                return pl.BlockSpec(shape, imap)
            resident_eff = resident if single_buffer else 2 * resident
            need = 2 * tn * (per_row_x + out_p * 4) + tn * hid_p * 4 \
                   + resident_eff + (2 << 20)
            vmem_limit = int(min(max(need, 32 << 20), cap))
            const = lambda i, k: (0, 0)
            in_specs = [
                pl.BlockSpec((tn, tk), lambda i, k: (i, k)),
                pl.BlockSpec((tk, hid_p), lambda i, k: (k, 0)),
                cspec((1, hid_p), const),
                cspec((hid_p, out_p), const),
                cspec((1, out_p), const),
            ]
            return pl.pallas_call(
                _make_nopool_kernel(in_dim, tk),
                out_shape=jax.ShapeDtypeStruct((n, out_p), jnp.float32),
                grid=(pl.cdiv(n, tn), k_steps),
                in_specs=in_specs,
                out_specs=pl.BlockSpec((tn, out_p), lambda i, k: (i, 0)),
                scratch_shapes=[pltpu.VMEM((tn, hid_p), jnp.float32)],
                compiler_params=pltpu.CompilerParams(
                    dimension_semantics=("parallel", "arbitrary"),
                    vmem_limit_bytes=vmem_limit),
            )(x_in, w0_p, t0_p, w1_p, t1_p)

        try:
            out_padded = _call(True)
        except Exception:
            out_padded = _call(False)

    return out_padded[:, :out]


# ------------------------------- demo -------------------------------------- #

def _bn_ref(x, bn, eps):
    if bn is None:
        return x
    return (x - bn["mean"]) / jnp.sqrt(bn["var"] + eps) * bn["gamma"] + bn["beta"]


if __name__ == "__main__":
    N, C, H, W = 2, 4, 16, 16
    HID, OUT = 32, 8
    EPS = 1e-5

    key = jax.random.PRNGKey(0)
    kx, k0, k1, k2, kb = jax.random.split(key, 5)
    x = jax.random.normal(kx, (N, C, H, W), dtype=jnp.float32)

    # Linear weights N(0, 0.01), stored as (in_features, out_features); no bias
    # (with_bias=False, the SimCLR default).
    w0 = (0.01 * jax.random.normal(k0, (C, HID))).astype(jnp.float32)
    w1 = (0.01 * jax.random.normal(k1, (HID, OUT))).astype(jnp.float32)
    w0_flat = (0.01 * jax.random.normal(k2, (C * H * W, HID))).astype(jnp.float32)

    # BN parameters (inference form), non-trivial so the BN math is exercised.
    kb0, kb1, kb2, kb3, kb4, kb5, kb6, kb7 = jax.random.split(kb, 8)
    bn0 = dict(
        gamma=1.0 + 0.1 * jax.random.normal(kb0, (HID,)),
        beta=0.1 * jax.random.normal(kb1, (HID,)),
        mean=0.1 * jax.random.normal(kb2, (HID,)),
        var=1.0 + 0.1 * jnp.abs(jax.random.normal(kb3, (HID,))),
    )
    bn1 = dict(
        gamma=1.0 + 0.1 * jax.random.normal(kb4, (OUT,)),
        beta=0.1 * jax.random.normal(kb5, (OUT,)),
        mean=0.1 * jax.random.normal(kb6, (OUT,)),
        var=1.0 + 0.1 * jnp.abs(jax.random.normal(kb7, (OUT,))),
    )

    # ---- with_avg_pool=True (SimCLR default path) ----
    inputs = [x]                     # module forward takes a length-1 list
    assert len(inputs) == 1
    out = nonlinear_neck_simclr(inputs[0], w0, w1, bn0, bn1,
                                with_avg_pool=True, eps=EPS)
    out = jax.block_until_ready(out)
    result = [out]                   # forward returns a single-element list

    pooled = jnp.mean(x, axis=(2, 3))
    h_ref = jnp.maximum(_bn_ref(pooled @ w0, bn0, EPS), 0.0)
    o_ref = _bn_ref(h_ref @ w1, bn1, EPS)
    assert out.shape == (N, OUT)
    assert jnp.allclose(out, o_ref, atol=2e-3, rtol=2e-3), \
        float(jnp.max(jnp.abs(out - o_ref)))          # bf16-weight tolerance

    # ---- with_avg_pool=False (flattened, K-tiled accumulator path) ----
    out2 = nonlinear_neck_simclr(x, w0_flat, w1, bn0, bn1,
                                 with_avg_pool=False, eps=EPS, k_tile=384)
    out2 = jax.block_until_ready(out2)
    flat = x.reshape(N, -1)
    h2_ref = jnp.maximum(_bn_ref(flat @ w0_flat, bn0, EPS), 0.0)
    o2_ref = _bn_ref(h2_ref @ w1, bn1, EPS)
    assert out2.shape == (N, OUT)
    assert jnp.allclose(out2, o2_ref, atol=5e-3, rtol=5e-3), \
        float(jnp.max(jnp.abs(out2 - o2_ref)))

    print("KERNEL_OK")
</pallas_src>

<mosaic_0001>
module attributes {stable_mosaic.version = 11 : i64} {
  func.func @kernel(%arg0: i32, %arg1: memref<2x4x256xf32, #tpu.memory_space<vmem>>, %arg2: memref<4x128xbf16, #tpu.memory_space<vmem>>, %arg3: memref<1x128xf32, #tpu.memory_space<vmem>>, %arg4: memref<128x128xbf16, #tpu.memory_space<vmem>>, %arg5: memref<1x128xf32, #tpu.memory_space<vmem>>, %arg6: memref<2x128xf32, #tpu.memory_space<vmem>>) attributes {dimension_semantics = [#tpu.dimension_semantics<parallel>], iteration_bounds = array<i64: 1>, scalar_prefetch = 0 : i64, scratch_operands = 0 : i64, tpu.core_type = #tpu.core_type<tc>, window_params = [{transform_indices = @transform_0, window_bounds = array<i64: 2, 4, 256>}, {pipeline_mode = #tpu.pipeline_mode<synchronous>, transform_indices = @transform_1, window_bounds = array<i64: 4, 128>}, {pipeline_mode = #tpu.pipeline_mode<synchronous>, transform_indices = @transform_2, window_bounds = array<i64: 1, 128>}, {pipeline_mode = #tpu.pipeline_mode<synchronous>, transform_indices = @transform_3, window_bounds = array<i64: 128, 128>}, {pipeline_mode = #tpu.pipeline_mode<synchronous>, transform_indices = @transform_4, window_bounds = array<i64: 1, 128>}, {transform_indices = @transform_5, window_bounds = array<i64: 2, 128>}]} {
    %c0 = arith.constant 0 : index
    %c0_0 = arith.constant 0 : index
    %c0_1 = arith.constant 0 : index
    %0 = vector.load %arg1[%c0, %c0_0, %c0_1] : memref<2x4x256xf32, #tpu.memory_space<vmem>>, vector<2x4x256xf32>
    %cst = arith.constant dense<0.000000e+00> : vector<2x4xf32>
    %1 = vector.multi_reduction <add>, %0, %cst [2] : vector<2x4x256xf32> to vector<2x4xf32>
    %2 = arith.truncf %1 : vector<2x4xf32> to vector<2x4xbf16>
    %c0_2 = arith.constant 0 : index
    %c0_3 = arith.constant 0 : index
    %3 = vector.load %arg2[%c0_2, %c0_3] : memref<4x128xbf16, #tpu.memory_space<vmem>>, vector<4x128xbf16>
    %cst_4 = arith.constant dense<0.000000e+00> : vector<2x128xf32>
    %4 = tpu.matmul %2, %3, %cst_4 {dimension_numbers = #tpu.dot_dimension_numbers<[1], [0], [0], [1], [0, 0, 1, 1], [], []>} : vector<2x4xbf16>, vector<4x128xbf16>, vector<2x128xf32> -> vector<2x128xf32>
    %c0_5 = arith.constant 0 : index
    %c0_6 = arith.constant 0 : index
    %5 = vector.load %arg3[%c0_5, %c0_6] : memref<1x128xf32, #tpu.memory_space<vmem>>, vector<1x128xf32>
    %6 = vector.broadcast %5 : vector<1x128xf32> to vector<2x128xf32>
    %7 = arith.addf %4, %6 : vector<2x128xf32>
    %cst_7 = arith.constant 0.000000e+00 : f32
    %8 = vector.broadcast %cst_7 : f32 to vector<2x128xf32>
    %9 = arith.maximumf %7, %8 : vector<2x128xf32>
    %10 = arith.truncf %9 : vector<2x128xf32> to vector<2x128xbf16>
    %c0_8 = arith.constant 0 : index
    %c0_9 = arith.constant 0 : index
    %11 = vector.load %arg4[%c0_8, %c0_9] : memref<128x128xbf16, #tpu.memory_space<vmem>>, vector<128x128xbf16>
    %cst_10 = arith.constant dense<0.000000e+00> : vector<2x128xf32>
    %12 = tpu.matmul %10, %11, %cst_10 {dimension_numbers = #tpu.dot_dimension_numbers<[1], [0], [0], [1], [0, 0, 1, 1], [], []>} : vector<2x128xbf16>, vector<128x128xbf16>, vector<2x128xf32> -> vector<2x128xf32>
    %c0_11 = arith.constant 0 : index
    %c0_12 = arith.constant 0 : index
    %13 = vector.load %arg5[%c0_11, %c0_12] : memref<1x128xf32, #tpu.memory_space<vmem>>, vector<1x128xf32>
    %14 = vector.broadcast %13 : vector<1x128xf32> to vector<2x128xf32>
    %15 = arith.addf %12, %14 : vector<2x128xf32>
    %c0_13 = arith.constant 0 : index
    %c0_14 = arith.constant 0 : index
    %16 = vector.load %arg6[%c0_13, %c0_14] : memref<2x128xf32, #tpu.memory_space<vmem>>, vector<2x128xf32>
    tpu.vector_store %arg6[%c0_13, %c0_14], %15 {strides = array<i32>} : memref<2x128xf32, #tpu.memory_space<vmem>>, vector<2x128xf32>,
    return
  }
  func.func @transform_0(%arg0: i32) -> (i32, i32, i32) {
    %c0_i32 = arith.constant 0 : i32
    %c0_i32_0 = arith.constant 0 : i32
    %c0_i32_1 = arith.constant 0 : i32
    return %arg0, %c0_i32, %c0_i32_0 : i32, i32, i32
  }
  func.func @transform_1(%arg0: i32) -> (i32, i32) {
    %c0_i32 = arith.constant 0 : i32
    %c0_i32_0 = arith.constant 0 : i32
    %c0_i32_1 = arith.constant 0 : i32
    return %c0_i32, %c0_i32_0 : i32, i32
  }
  func.func @transform_2(%arg0: i32) -> (i32, i32) {
    %c0_i32 = arith.constant 0 : i32
    %c0_i32_0 = arith.constant 0 : i32
    %c0_i32_1 = arith.constant 0 : i32
    return %c0_i32, %c0_i32_0 : i32, i32
  }
  func.func @transform_3(%arg0: i32) -> (i32, i32) {
    %c0_i32 = arith.constant 0 : i32
    %c0_i32_0 = arith.constant 0 : i32
    %c0_i32_1 = arith.constant 0 : i32
    return %c0_i32, %c0_i32_0 : i32, i32
  }
  func.func @transform_4(%arg0: i32) -> (i32, i32) {
    %c0_i32 = arith.constant 0 : i32
    %c0_i32_0 = arith.constant 0 : i32
    %c0_i32_1 = arith.constant 0 : i32
    return %c0_i32, %c0_i32_0 : i32, i32
  }
  func.func @transform_5(%arg0: i32) -> (i32, i32) {
    %c0_i32 = arith.constant 0 : i32
    %c0_i32_0 = arith.constant 0 : i32
    return %arg0, %c0_i32 : i32, i32
  }
}

module attributes {stable_mosaic.version = 11 : i64} {
  func.func @kernel(%arg0: i32, %arg1: memref<2x4x256xf32, #tpu.memory_space<vmem>>, %arg2: memref<4x128xbf16, #tpu.memory_space<vmem>>, %arg3: memref<1x128xf32, #tpu.memory_space<vmem>>, %arg4: memref<128x128xbf16, #tpu.memory_space<vmem>>, %arg5: memref<1x128xf32, #tpu.memory_space<vmem>>, %arg6: memref<2x128xf32, #tpu.memory_space<vmem>>) attributes {dimension_semantics = [#tpu.dimension_semantics<parallel>], iteration_bounds = array<i64: 1>, scalar_prefetch = 0 : i64, scratch_operands = 0 : i64, tpu.core_type = #tpu.core_type<tc>, window_params = [{transform_indices = @transform_0, window_bounds = array<i64: 2, 4, 256>}, {pipeline_mode = #tpu.pipeline_mode<synchronous>, transform_indices = @transform_1, window_bounds = array<i64: 4, 128>}, {pipeline_mode = #tpu.pipeline_mode<synchronous>, transform_indices = @transform_2, window_bounds = array<i64: 1, 128>}, {pipeline_mode = #tpu.pipeline_mode<synchronous>, transform_indices = @transform_3, window_bounds = array<i64: 128, 128>}, {pipeline_mode = #tpu.pipeline_mode<synchronous>, transform_indices = @transform_4, window_bounds = array<i64: 1, 128>}, {transform_indices = @transform_5, window_bounds = array<i64: 2, 128>}]} {
    %c0 = arith.constant 0 : index
    %c0_0 = arith.constant 0 : index
    %c0_1 = arith.constant 0 : index
    %0 = vector.load %arg1[%c0, %c0_0, %c0_1] : memref<2x4x256xf32, #tpu.memory_space<vmem>>, vector<2x4x256xf32>
    %cst = arith.constant dense<0.000000e+00> : vector<2x4xf32>
    %1 = vector.multi_reduction <add>, %0, %cst [2] : vector<2x4x256xf32> to vector<2x4xf32>
    %2 = arith.truncf %1 : vector<2x4xf32> to vector<2x4xbf16>
    %c0_2 = arith.constant 0 : index
    %c0_3 = arith.constant 0 : index
    %3 = vector.load %arg2[%c0_2, %c0_3] : memref<4x128xbf16, #tpu.memory_space<vmem>>, vector<4x128xbf16>
    %cst_4 = arith.constant dense<0.000000e+00> : vector<2x128xf32>
    %4 = tpu.matmul %2, %3, %cst_4 {dimension_numbers = #tpu.dot_dimension_numbers<[1], [0], [0], [1], [0, 0, 1, 1], [], []>} : vector<2x4xbf16>, vector<4x128xbf16>, vector<2x128xf32> -> vector<2x128xf32>
    %c0_5 = arith.constant 0 : index
    %c0_6 = arith.constant 0 : index
    %5 = vector.load %arg3[%c0_5, %c0_6] : memref<1x128xf32, #tpu.memory_space<vmem>>, vector<1x128xf32>
    %6 = vector.broadcast %5 : vector<1x128xf32> to vector<2x128xf32>
    %7 = arith.addf %4, %6 : vector<2x128xf32>
    %cst_7 = arith.constant 0.000000e+00 : f32
    %8 = vector.broadcast %cst_7 : f32 to vector<2x128xf32>
    %9 = arith.maximumf %7, %8 : vector<2x128xf32>
    %10 = arith.truncf %9 : vector<2x128xf32> to vector<2x128xbf16>
    %c0_8 = arith.constant 0 : index
    %c0_9 = arith.constant 0 : index
    %11 = vector.load %arg4[%c0_8, %c0_9] : memref<128x128xbf16, #tpu.memory_space<vmem>>, vector<128x128xbf16>
    %cst_10 = arith.constant dense<0.000000e+00> : vector<2x128xf32>
    %12 = tpu.matmul %10, %11, %cst_10 {dimension_numbers = #tpu.dot_dimension_numbers<[1], [0], [0], [1], [0, 0, 1, 1], [], []>} : vector<2x128xbf16>, vector<128x128xbf16>, vector<2x128xf32> -> vector<2x128xf32>
    %c0_11 = arith.constant 0 : index
    %c0_12 = arith.constant 0 : index
    %13 = vector.load %arg5[%c0_11, %c0_12] : memref<1x128xf32, #tpu.memory_space<vmem>>, vector<1x128xf32>
    %14 = vector.broadcast %13 : vector<1x128xf32> to vector<2x128xf32>
    %15 = arith.addf %12, %14 : vector<2x128xf32>
    %c0_13 = arith.constant 0 : index
    %c0_14 = arith.constant 0 : index
    %16 = vector.load %arg6[%c0_13, %c0_14] : memref<2x128xf32, #tpu.memory_space<vmem>>, vector<2x128xf32>
    tpu.vector_store %arg6[%c0_13, %c0_14], %15 {strides = array<i32>} : memref<2x128xf32, #tpu.memory_space<vmem>>, vector<2x128xf32>,
    return
  }
  func.func @transform_0(%arg0: i32) -> (i32, i32, i32) {
    %c0_i32 = arith.constant 0 : i32
    %c0_i32_0 = arith.constant 0 : i32
    %c0_i32_1 = arith.constant 0 : i32
    return %arg0, %c0_i32, %c0_i32_0 : i32, i32, i32
  }
  func.func @transform_1(%arg0: i32) -> (i32, i32) {
    %c0_i32 = arith.constant 0 : i32
    %c0_i32_0 = arith.constant 0 : i32
    %c0_i32_1 = arith.constant 0 : i32
    return %c0_i32, %c0_i32_0 : i32, i32
  }
  func.func @transform_2(%arg0: i32) -> (i32, i32) {
    %c0_i32 = arith.constant 0 : i32
    %c0_i32_0 = arith.constant 0 : i32
    %c0_i32_1 = arith.constant 0 : i32
    return %c0_i32, %c0_i32_0 : i32, i32
  }
  func.func @transform_3(%arg0: i32) -> (i32, i32) {
    %c0_i32 = arith.constant 0 : i32
    %c0_i32_0 = arith.constant 0 : i32
    %c0_i32_1 = arith.constant 0 : i32
    return %c0_i32, %c0_i32_0 : i32, i32
  }
  func.func @transform_4(%arg0: i32) -> (i32, i32) {
    %c0_i32 = arith.constant 0 : i32
    %c0_i32_0 = arith.constant 0 : i32
    %c0_i32_1 = arith.constant 0 : i32
    return %c0_i32, %c0_i32_0 : i32, i32
  }
  func.func @transform_5(%arg0: i32) -> (i32, i32) {
    %c0_i32 = arith.constant 0 : i32
    %c0_i32_0 = arith.constant 0 : i32
    return %arg0, %c0_i32 : i32, i32
  }
}

</mosaic_0001>

<llo_original>
// kernel: tpu_custom_call.1
$region0: #{tpu_custom_call.1}
  #allocation0 [shape = 'u32[]', space=smem, size = 0x4, offset = 0x4, fixed_abs, tag = 'smem constant byte address 0x4 - core index']
  #allocation1 [shape = 'u32[144,128]{1,0:T(1,128)}', space=vmem, size = 0x12000, scoped, tag = 'internal scratch']
  %s0 = inlined_call_operand.hbm [shape: f32[2,4,256], index: 0, kind: input, shape index: {}]
  %s1 = inlined_call_operand.vmem [shape: bf16[4,128], index: 1, kind: input, shape index: {}]
  %s2 = inlined_call_operand.vmem [shape: f32[1,128], index: 2, kind: input, shape index: {}]
  %s3 = inlined_call_operand.hbm [shape: bf16[128,128], index: 3, kind: input, shape index: {}]
  %s4 = inlined_call_operand.vmem [shape: f32[1,128], index: 4, kind: input, shape index: {}]
  %s5 = inlined_call_operand.hbm [shape: f32[2,128], index: 5, kind: output, shape index: {}]
  %s6 = sld [smem:[#allocation0]]
  $region38: #{tpu_custom_call.1} parent=0
    _
  %s8 = ssub.s32 1, %s6
  %s9 = scalar_select 0, %s8, %s6
  $region1: #{tpu_custom_call.1} parent=0
    #allocation2 [shape = 'u8[8192]{0}', space=vmem, size = 0x2000, scoped, tag = 'input window, operand 0, single buffered']
    #allocation3 [shape = 's32[1]{0}', space=sflag, size = 0x4, scoped, tag = 'scoped memory for tpu_custom_call.1']
    #allocation4 [shape = 's32[1]{0}', space=sflag, size = 0x4, scoped, tag = 'scoped memory for tpu_custom_call.1']
    #allocation5 [shape = 'u8[32768]{0}', space=vmem, size = 0x8000, scoped, tag = 'input window, operand 3, single buffered']
    #allocation6 [shape = 's32[1]{0}', space=sflag, size = 0x4, scoped, tag = 'scoped memory for tpu_custom_call.1']
    #allocation7 [shape = 'u8[1024]{0}', space=vmem, size = 0x400, scoped, tag = 'output window, operand 0, single buffered']
    %10 = vsyncpa [#allocation3], 0
    %11 = vsyncpa [#allocation6], 0
    %12 = vsyncpa [#allocation4], 0
    // Predicated region
    $region2: #{tpu_custom_call.1} parent=1 // pred_check
      _
    $region3: #{tpu_custom_call.1} parent=1 // pred_check_branch
      %14 = sbr.rel (0) target = $region5
    $region4: #{tpu_custom_call.1} parent=1 // pred_region
      %s16 = ssub.s32 256, 256
      %17 = vsyncadd [#allocation3], %s16
      %s18 = sshll.u32 [#allocation2], 4
      %s19 = int_to_ptr.vmem [resolvable:$true] %s18
      %24 = dma.hbm_to_vmem [thread:$0]  %s0, 256, %s19, [#allocation3], 128, 128, 8
    $region5: #{tpu_custom_call.1} parent=1 // pred_fallthru
      _
    // Predicated region
    $region6: #{tpu_custom_call.1} parent=1 // pred_check
      _
    $region7: #{tpu_custom_call.1} parent=1 // pred_check_branch
      %26 = sbr.rel (0) target = $region9
    $region8: #{tpu_custom_call.1} parent=1 // pred_region
      _
    $region9: #{tpu_custom_call.1} parent=1 // pred_fallthru
      _
    // Predicated region
    $region10: #{tpu_custom_call.1} parent=1 // pred_check
      _
    $region11: #{tpu_custom_call.1} parent=1 // pred_check_branch
      %28 = sbr.rel (0) target = $region13
    $region12: #{tpu_custom_call.1} parent=1 // pred_region
      _
    $region13: #{tpu_custom_call.1} parent=1 // pred_fallthru
      _
    // Predicated region
    $region14: #{tpu_custom_call.1} parent=1 // pred_check
      _
    $region15: #{tpu_custom_call.1} parent=1 // pred_check_branch
      %30 = sbr.rel (0) target = $region17
    $region16: #{tpu_custom_call.1} parent=1 // pred_region
      %s32 = ssub.s32 1024, 1024
      %33 = vsyncadd [#allocation6], %s32
      %s34 = sshll.u32 [#allocation5], 4
      %s35 = int_to_ptr.vmem [resolvable:$true] %s34
      %40 = dma.hbm_to_vmem [thread:$0]  %s3, 1024, %s35, [#allocation6], 64, 64, 4
    $region17: #{tpu_custom_call.1} parent=1 // pred_fallthru
      _
    // Predicated region
    $region18: #{tpu_custom_call.1} parent=1 // pred_check
      _
    $region19: #{tpu_custom_call.1} parent=1 // pred_check_branch
      %42 = sbr.rel (0) target = $region21
    $region20: #{tpu_custom_call.1} parent=1 // pred_region
      _
    $region21: #{tpu_custom_call.1} parent=1 // pred_fallthru
      _
    // Predicated region
    $region22: #{tpu_custom_call.1} parent=1 // pred_check
      _
    $region23: #{tpu_custom_call.1} parent=1 // pred_check_branch
      %44 = sbr.rel (0) target = $region25
    $region24: #{tpu_custom_call.1} parent=1 // pred_region
      %45 = dma.done [#allocation3], 256
    $region25: #{tpu_custom_call.1} parent=1 // pred_fallthru
      _
    // Predicated region
    $region26: #{tpu_custom_call.1} parent=1 // pred_check
      _
    $region27: #{tpu_custom_call.1} parent=1 // pred_check_branch
      %47 = sbr.rel (0) target = $region29
    $region28: #{tpu_custom_call.1} parent=1 // pred_region
      %48 = dma.done [#allocation6], 1024
    $region29: #{tpu_custom_call.1} parent=1 // pred_fallthru
      _
    %v50 = vld [vmem:[#allocation2] sm:$0xff]
    %v51 = vld [vmem:[#allocation2 + $0x8] sm:$0xff]
    %v54 = vcombine.high %v50, %v50
    %v55 = vcombine.high %v51, %v51
    %vm58 = vcmask 1043456
    %v59 = vsel %vm58, %v50, 0.0
    %v60 = vsel %vm58, %v54, 0.0
    %v61 = vadd.f32 %v59, %v60
    %62 = vadd.xlane.f32.xlu0 %v61
    %v63 = vpop.xlane.xlu0 %62
    %v64 = vsel %vm58, %v51, 0.0
    %v65 = vsel %vm58, %v55, 0.0
    %v66 = vadd.f32 %v64, %v65
    %67 = vadd.xlane.f32.xlu0 %v66
    %v68 = vpop.xlane.xlu0 %67
    %v69 = vpack.c.bf16 %v63, %v63
    %v70 = vpack.c.bf16 %v68, %v68
    %v71 = vld [vmem:[%s1] sm:$0x3]
    %v72 = vld [vmem:[%s2] sm:$0x1]
    %v74 = vlaneseq
    %v75 = vshrl.u32 %v74, 7
    %v76 = vsub.s32 0, %v75
    %v77 = vrot.slane %v72, %v76
    %v81 = vunpack.c.l.b16 %v69
    %v82 = vunpack.c.l.b16 %v70
    %v83 = vlaneseq
    %v84 = vand.u32 %v83, 127
    %v85 = vlaneseq
    %v86 = vshrl.u32 %v85, 7
    %v87 = vsub.s32 %v84, %v86
    %v88 = vrot.slane %v81, %v87
    %v89 = vlaneseq
    %v90 = vshrl.u32 %v89, 7
    %v91 = vsub.s32 %v84, %v90
    %v92 = vrot.slane %v82, %v91
    %vm93 = vcmask 1041409
    %v94 = vsel %vm93, %v92, %v88
    %v95 = vpack.c.b16 %v94, %v94
    %vm96 = vcmask 31744
    %v98 = vsel %vm96, %v95, 0
    %vm100 = vcmask 1041408
    %v102 = vsel %vm100, %v71, 0
    %104 = vmatprep.subr.bf16.mxu0 0
    %105 = vmatpush1.bf16.msra.mxu0 %v102
    %106 = vmatprep.subr.bf16.mxu0 0
    %107 = vmatpush1.bf16.msra.mxu0 0
    %108 = vmatprep.subr.bf16.mxu0 0
    %109 = vmatpush1.bf16.msra.mxu0 0
    %110 = vmatprep.subr.bf16.mxu0 0
    %111 = vmatpush1.bf16.msra.mxu0 0
    %112 = vmatprep.subr.bf16.mxu0 0
    %113 = vmatpush1.bf16.msra.mxu0 0
    %114 = vmatprep.subr.bf16.mxu0 0
    %115 = vmatpush1.bf16.msra.mxu0 0
    %116 = vmatprep.subr.bf16.mxu0 0
    %117 = vmatpush1.bf16.msra.mxu0 0
    %118 = vmatprep.subr.bf16.mxu0 0
    %119 = vmatpush1.bf16.msra.mxu0 0
    %120 = vmatprep.subr.bf16.mxu0 0
    %121 = vmatpush1.bf16.msra.mxu0 0
    %122 = vmatprep.subr.bf16.mxu0 0
    %123 = vmatpush1.bf16.msra.mxu0 0
    %124 = vmatprep.subr.bf16.mxu0 0
    %125 = vmatpush1.bf16.msra.mxu0 0
    %126 = vmatprep.subr.bf16.mxu0 0
    %127 = vmatpush1.bf16.msra.mxu0 0
    %128 = vmatprep.subr.bf16.mxu0 0
    %129 = vmatpush1.bf16.msra.mxu0 0
    %130 = vmatprep.subr.bf16.mxu0 0
    %131 = vmatpush1.bf16.msra.mxu0 0
    %132 = vmatprep.subr.bf16.mxu0 0
    %133 = vmatpush1.bf16.msra.mxu0 0
    %134 = vmatprep.subr.bf16.mxu0 0
    %135 = vmatpush1.bf16.msra.mxu0 0
    %136 = vmatprep.mubr.bf16.mxu0 0
    %137 = vmatmul.mubr.bf16.gmra.mrb[0].mxu0 %v98
    %v138 = vpop.f32.mrb[0].mxu0
    %v139 = vadd.f32 %v77, %v138
    %v140 = vpop.f32.mrb[0].mxu0
    %v141 = vpop.f32.mrb[0].mxu0
    %v142 = vpop.f32.mrb[0].mxu0
    %143 = vdwg.mxu0
    %v144 = vmax.f32 %v139, 0.0
    %v145 = vpack.c.bf16 %v144, %v144
    %v146 = vld [vmem:[#allocation5] sm:$0xf]
    %v147 = vld [vmem:[#allocation5 + $0x4] sm:$0xf]
    %v148 = vld [vmem:[#allocation5 + $0x8] sm:$0xf]
    %v149 = vld [vmem:[#allocation5 + $0xc] sm:$0xf]
    %v150 = vld [vmem:[#allocation5 + $0x10] sm:$0xf]
    %v151 = vld [vmem:[#allocation5 + $0x14] sm:$0xf]
    %v152 = vld [vmem:[#allocation5 + $0x18] sm:$0xf]
    %v153 = vld [vmem:[#allocation5 + $0x1c] sm:$0xf]
    %v154 = vld [vmem:[#allocation5 + $0x20] sm:$0xf]
    %v155 = vld [vmem:[#allocation5 + $0x24] sm:$0xf]
    %v156 = vld [vmem:[#allocation5 + $0x28] sm:$0xf]
    %v157 = vld [vmem:[#allocation5 + $0x2c] sm:$0xf]
    %v158 = vld [vmem:[#allocation5 + $0x30] sm:$0xf]
    %v159 = vld [vmem:[#allocation5 + $0x34] sm:$0xf]
    %v160 = vld [vmem:[#allocation5 + $0x38] sm:$0xf]
    %v161 = vld [vmem:[#allocation5 + $0x3c] sm:$0xf]
    %v162 = vld [vmem:[%s4] sm:$0x1]
    %v164 = vlaneseq
    %v165 = vshrl.u32 %v164, 7
    %v166 = vsub.s32 0, %v165
    %v167 = vrot.slane %v162, %v166
    %v185 = vunpack.c.l.b16 %v146
    %v186 = vunpack.c.l.b16 %v147
    %v187 = vunpack.c.l.b16 %v148
    %v188 = vunpack.c.l.b16 %v149
    %v189 = vunpack.c.l.b16 %v150
    %v190 = vunpack.c.l.b16 %v151
    %v191 = vunpack.c.l.b16 %v152
    %v192 = vunpack.c.l.b16 %v153
    %v193 = vunpack.c.l.b16 %v154
    %v194 = vunpack.c.l.b16 %v155
    %v195 = vunpack.c.l.b16 %v156
    %v196 = vunpack.c.l.b16 %v157
    %v197 = vunpack.c.l.b16 %v158
    %v198 = vunpack.c.l.b16 %v159
    %v199 = vunpack.c.l.b16 %v160
    %v200 = vunpack.c.l.b16 %v161
    %v201 = vpack.c.b16 %v186, %v185
    %v202 = vpack.c.b16 %v188, %v187
    %v203 = vpack.c.b16 %v190, %v189
    %v204 = vpack.c.b16 %v192, %v191
    %v205 = vpack.c.b16 %v194, %v193
    %v206 = vpack.c.b16 %v196, %v195
    %v207 = vpack.c.b16 %v198, %v197
    %v208 = vpack.c.b16 %v200, %v199
    %217 = vmatprep.subr.bf16.mxu0 0
    %218 = vmatpush1.bf16.msra.mxu0 %v201
    %219 = vmatprep.subr.bf16.mxu0 0
    %220 = vmatpush1.bf16.msra.mxu0 %v202
    %221 = vmatprep.subr.bf16.mxu0 0
    %222 = vmatpush1.bf16.msra.mxu0 %v203
    %223 = vmatprep.subr.bf16.mxu0 0
    %224 = vmatpush1.bf16.msra.mxu0 %v204
    %225 = vmatprep.subr.bf16.mxu0 0
    %226 = vmatpush1.bf16.msra.mxu0 %v205
    %227 = vmatprep.subr.bf16.mxu0 0
    %228 = vmatpush1.bf16.msra.mxu0 %v206
    %229 = vmatprep.subr.bf16.mxu0 0
    %230 = vmatpush1.bf16.msra.mxu0 %v207
    %231 = vmatprep.subr.bf16.mxu0 0
    %232 = vmatpush1.bf16.msra.mxu0 %v208
    %233 = vmatprep.subr.bf16.mxu0 0
    %234 = vmatpush1.bf16.msra.mxu0 0
    %235 = vmatprep.subr.bf16.mxu0 0
    %236 = vmatpush1.bf16.msra.mxu0 0
    %237 = vmatprep.subr.bf16.mxu0 0
    %238 = vmatpush1.bf16.msra.mxu0 0
    %239 = vmatprep.subr.bf16.mxu0 0
    %240 = vmatpush1.bf16.msra.mxu0 0
    %241 = vmatprep.subr.bf16.mxu0 0
    %242 = vmatpush1.bf16.msra.mxu0 0
    %243 = vmatprep.subr.bf16.mxu0 0
    %244 = vmatpush1.bf16.msra.mxu0 0
    %245 = vmatprep.subr.bf16.mxu0 0
    %246 = vmatpush1.bf16.msra.mxu0 0
    %247 = vmatprep.subr.bf16.mxu0 0
    %248 = vmatpush1.bf16.msra.mxu0 0
    %249 = vmatprep.mubr.bf16.mxu0 0
    %250 = vmatmul.mubr.bf16.gmra.mrb[0].mxu0 %v145
    %v251 = vpop.f32.mrb[0].mxu0
    %v252 = vadd.f32 %v167, %v251
    %v253 = vpop.f32.mrb[0].mxu0
    %v254 = vpop.f32.mrb[0].mxu0
    %v255 = vpop.f32.mrb[0].mxu0
    %256 = vdwg.mxu0
    %257 = vst [vmem:[#allocation7] sm:$0x3] %v252
    // Predicated region
    $region30: #{tpu_custom_call.1} parent=1 // pred_check
      _
    $region31: #{tpu_custom_call.1} parent=1 // pred_check_branch
      %259 = sbr.rel (0) target = $region33
    $region32: #{tpu_custom_call.1} parent=1 // pred_region
      %s261 = ssub.s32 32, 32
      %262 = vsyncadd [#allocation4], %s261
      %s264 = sshll.u32 [#allocation7], 4
      %s265 = int_to_ptr.vmem [resolvable:$true] %s264
      %267 = dma.vmem_to_hbm [thread:$0]  %s265, 32, %s5, [#allocation4]
    $region33: #{tpu_custom_call.1} parent=1 // pred_fallthru
      _
    // Predicated region
    $region34: #{tpu_custom_call.1} parent=1 // pred_check
      _
    $region35: #{tpu_custom_call.1} parent=1 // pred_check_branch
      %269 = sbr.rel (0) target = $region37
    $region36: #{tpu_custom_call.1} parent=1 // pred_region
      %270 = dma.done [#allocation4], 32
    $region37: #{tpu_custom_call.1} parent=1 // pred_fallthru
      _
    %271 = vsyncpa [#allocation3], 1
    %272 = vsyncpa [#allocation6], 1
    %273 = vsyncpa [#allocation4], 1

// kernel: tpu_custom_call.1
$region0: #{tpu_custom_call.1}
  #allocation0 [shape = 'u32[]', space=smem, size = 0x4, offset = 0x4, fixed_abs, tag = 'smem constant byte address 0x4 - core index']
  #allocation1 [shape = 'u32[144,128]{1,0:T(1,128)}', space=vmem, size = 0x12000, scoped, tag = 'internal scratch']
  %s0 = inlined_call_operand.hbm [shape: f32[2,4,256], index: 0, kind: input, shape index: {}]
  %s1 = inlined_call_operand.vmem [shape: bf16[4,128], index: 1, kind: input, shape index: {}]
  %s2 = inlined_call_operand.vmem [shape: f32[1,128], index: 2, kind: input, shape index: {}]
  %s3 = inlined_call_operand.hbm [shape: bf16[128,128], index: 3, kind: input, shape index: {}]
  %s4 = inlined_call_operand.vmem [shape: f32[1,128], index: 4, kind: input, shape index: {}]
  %s5 = inlined_call_operand.hbm [shape: f32[2,128], index: 5, kind: output, shape index: {}]
  %s6 = sld [smem:[#allocation0]]
  $region38: #{tpu_custom_call.1} parent=0
    _
  %s8 = ssub.s32 1, %s6
  %s9 = scalar_select 0, %s8, %s6
  $region1: #{tpu_custom_call.1} parent=0
    #allocation2 [shape = 'u8[8192]{0}', space=vmem, size = 0x2000, scoped, tag = 'input window, operand 0, single buffered']
    #allocation3 [shape = 's32[1]{0}', space=sflag, size = 0x4, scoped, tag = 'scoped memory for tpu_custom_call.1']
    #allocation4 [shape = 's32[1]{0}', space=sflag, size = 0x4, scoped, tag = 'scoped memory for tpu_custom_call.1']
    #allocation5 [shape = 'u8[32768]{0}', space=vmem, size = 0x8000, scoped, tag = 'input window, operand 3, single buffered']
    #allocation6 [shape = 's32[1]{0}', space=sflag, size = 0x4, scoped, tag = 'scoped memory for tpu_custom_call.1']
    #allocation7 [shape = 'u8[1024]{0}', space=vmem, size = 0x400, scoped, tag = 'output window, operand 0, single buffered']
    %10 = vsyncpa [#allocation3], 0
    %11 = vsyncpa [#allocation6], 0
    %12 = vsyncpa [#allocation4], 0
    // Predicated region
    $region2: #{tpu_custom_call.1} parent=1 // pred_check
      _
    $region3: #{tpu_custom_call.1} parent=1 // pred_check_branch
      %14 = sbr.rel (0) target = $region5
    $region4: #{tpu_custom_call.1} parent=1 // pred_region
      %s16 = ssub.s32 256, 256
      %17 = vsyncadd [#allocation3], %s16
      %s18 = sshll.u32 [#allocation2], 4
      %s19 = int_to_ptr.vmem [resolvable:$true] %s18
      %24 = dma.hbm_to_vmem [thread:$0]  %s0, 256, %s19, [#allocation3], 128, 128, 8
    $region5: #{tpu_custom_call.1} parent=1 // pred_fallthru
      _
    // Predicated region
    $region6: #{tpu_custom_call.1} parent=1 // pred_check
      _
    $region7: #{tpu_custom_call.1} parent=1 // pred_check_branch
      %26 = sbr.rel (0) target = $region9
    $region8: #{tpu_custom_call.1} parent=1 // pred_region
      _
    $region9: #{tpu_custom_call.1} parent=1 // pred_fallthru
      _
    // Predicated region
    $region10: #{tpu_custom_call.1} parent=1 // pred_check
      _
    $region11: #{tpu_custom_call.1} parent=1 // pred_check_branch
      %28 = sbr.rel (0) target = $region13
    $region12: #{tpu_custom_call.1} parent=1 // pred_region
      _
    $region13: #{tpu_custom_call.1} parent=1 // pred_fallthru
      _
    // Predicated region
    $region14: #{tpu_custom_call.1} parent=1 // pred_check
      _
    $region15: #{tpu_custom_call.1} parent=1 // pred_check_branch
      %30 = sbr.rel (0) target = $region17
    $region16: #{tpu_custom_call.1} parent=1 // pred_region
      %s32 = ssub.s32 1024, 1024
      %33 = vsyncadd [#allocation6], %s32
      %s34 = sshll.u32 [#allocation5], 4
      %s35 = int_to_ptr.vmem [resolvable:$true] %s34
      %40 = dma.hbm_to_vmem [thread:$0]  %s3, 1024, %s35, [#allocation6], 64, 64, 4
    $region17: #{tpu_custom_call.1} parent=1 // pred_fallthru
      _
    // Predicated region
    $region18: #{tpu_custom_call.1} parent=1 // pred_check
      _
    $region19: #{tpu_custom_call.1} parent=1 // pred_check_branch
      %42 = sbr.rel (0) target = $region21
    $region20: #{tpu_custom_call.1} parent=1 // pred_region
      _
    $region21: #{tpu_custom_call.1} parent=1 // pred_fallthru
      _
    // Predicated region
    $region22: #{tpu_custom_call.1} parent=1 // pred_check
      _
    $region23: #{tpu_custom_call.1} parent=1 // pred_check_branch
      %44 = sbr.rel (0) target = $region25
    $region24: #{tpu_custom_call.1} parent=1 // pred_region
      %45 = dma.done [#allocation3], 256
    $region25: #{tpu_custom_call.1} parent=1 // pred_fallthru
      _
    // Predicated region
    $region26: #{tpu_custom_call.1} parent=1 // pred_check
      _
    $region27: #{tpu_custom_call.1} parent=1 // pred_check_branch
      %47 = sbr.rel (0) target = $region29
    $region28: #{tpu_custom_call.1} parent=1 // pred_region
      %48 = dma.done [#allocation6], 1024
    $region29: #{tpu_custom_call.1} parent=1 // pred_fallthru
      _
    %v50 = vld [vmem:[#allocation2] sm:$0xff]
    %v51 = vld [vmem:[#allocation2 + $0x8] sm:$0xff]
    %v54 = vcombine.high %v50, %v50
    %v55 = vcombine.high %v51, %v51
    %vm58 = vcmask 1043456
    %v59 = vsel %vm58, %v50, 0.0
    %v60 = vsel %vm58, %v54, 0.0
    %v61 = vadd.f32 %v59, %v60
    %62 = vadd.xlane.f32.xlu0 %v61
    %v63 = vpop.xlane.xlu0 %62
    %v64 = vsel %vm58, %v51, 0.0
    %v65 = vsel %vm58, %v55, 0.0
    %v66 = vadd.f32 %v64, %v65
    %67 = vadd.xlane.f32.xlu0 %v66
    %v68 = vpop.xlane.xlu0 %67
    %v69 = vpack.c.bf16 %v63, %v63
    %v70 = vpack.c.bf16 %v68, %v68
    %v71 = vld [vmem:[%s1] sm:$0x3]
    %v72 = vld [vmem:[%s2] sm:$0x1]
    %v74 = vlaneseq
    %v75 = vshrl.u32 %v74, 7
    %v76 = vsub.s32 0, %v75
    %v77 = vrot.slane %v72, %v76
    %v81 = vunpack.c.l.b16 %v69
    %v82 = vunpack.c.l.b16 %v70
    %v83 = vlaneseq
    %v84 = vand.u32 %v83, 127
    %v85 = vlaneseq
    %v86 = vshrl.u32 %v85, 7
    %v87 = vsub.s32 %v84, %v86
    %v88 = vrot.slane %v81, %v87
    %v89 = vlaneseq
    %v90 = vshrl.u32 %v89, 7
    %v91 = vsub.s32 %v84, %v90
    %v92 = vrot.slane %v82, %v91
    %vm93 = vcmask 1041409
    %v94 = vsel %vm93, %v92, %v88
    %v95 = vpack.c.b16 %v94, %v94
    %vm96 = vcmask 31744
    %v98 = vsel %vm96, %v95, 0
    %vm100 = vcmask 1041408
    %v102 = vsel %vm100, %v71, 0
    %104 = vmatprep.subr.bf16.mxu0 0
    %105 = vmatpush1.bf16.msra.mxu0 %v102
    %106 = vmatprep.subr.bf16.mxu0 0
    %107 = vmatpush1.bf16.msra.mxu0 0
    %108 = vmatprep.subr.bf16.mxu0 0
    %109 = vmatpush1.bf16.msra.mxu0 0
    %110 = vmatprep.subr.bf16.mxu0 0
    %111 = vmatpush1.bf16.msra.mxu0 0
    %112 = vmatprep.subr.bf16.mxu0 0
    %113 = vmatpush1.bf16.msra.mxu0 0
    %114 = vmatprep.subr.bf16.mxu0 0
    %115 = vmatpush1.bf16.msra.mxu0 0
    %116 = vmatprep.subr.bf16.mxu0 0
    %117 = vmatpush1.bf16.msra.mxu0 0
    %118 = vmatprep.subr.bf16.mxu0 0
    %119 = vmatpush1.bf16.msra.mxu0 0
    %120 = vmatprep.subr.bf16.mxu0 0
    %121 = vmatpush1.bf16.msra.mxu0 0
    %122 = vmatprep.subr.bf16.mxu0 0
    %123 = vmatpush1.bf16.msra.mxu0 0
    %124 = vmatprep.subr.bf16.mxu0 0
    %125 = vmatpush1.bf16.msra.mxu0 0
    %126 = vmatprep.subr.bf16.mxu0 0
    %127 = vmatpush1.bf16.msra.mxu0 0
    %128 = vmatprep.subr.bf16.mxu0 0
    %129 = vmatpush1.bf16.msra.mxu0 0
    %130 = vmatprep.subr.bf16.mxu0 0
    %131 = vmatpush1.bf16.msra.mxu0 0
    %132 = vmatprep.subr.bf16.mxu0 0
    %133 = vmatpush1.bf16.msra.mxu0 0
    %134 = vmatprep.subr.bf16.mxu0 0
    %135 = vmatpush1.bf16.msra.mxu0 0
    %136 = vmatprep.mubr.bf16.mxu0 0
    %137 = vmatmul.mubr.bf16.gmra.mrb[0].mxu0 %v98
    %v138 = vpop.f32.mrb[0].mxu0
    %v139 = vadd.f32 %v77, %v138
    %v140 = vpop.f32.mrb[0].mxu0
    %v141 = vpop.f32.mrb[0].mxu0
    %v142 = vpop.f32.mrb[0].mxu0
    %143 = vdwg.mxu0
    %v144 = vmax.f32 %v139, 0.0
    %v145 = vpack.c.bf16 %v144, %v144
    %v146 = vld [vmem:[#allocation5] sm:$0xf]
    %v147 = vld [vmem:[#allocation5 + $0x4] sm:$0xf]
    %v148 = vld [vmem:[#allocation5 + $0x8] sm:$0xf]
    %v149 = vld [vmem:[#allocation5 + $0xc] sm:$0xf]
    %v150 = vld [vmem:[#allocation5 + $0x10] sm:$0xf]
    %v151 = vld [vmem:[#allocation5 + $0x14] sm:$0xf]
    %v152 = vld [vmem:[#allocation5 + $0x18] sm:$0xf]
    %v153 = vld [vmem:[#allocation5 + $0x1c] sm:$0xf]
    %v154 = vld [vmem:[#allocation5 + $0x20] sm:$0xf]
    %v155 = vld [vmem:[#allocation5 + $0x24] sm:$0xf]
    %v156 = vld [vmem:[#allocation5 + $0x28] sm:$0xf]
    %v157 = vld [vmem:[#allocation5 + $0x2c] sm:$0xf]
    %v158 = vld [vmem:[#allocation5 + $0x30] sm:$0xf]
    %v159 = vld [vmem:[#allocation5 + $0x34] sm:$0xf]
    %v160 = vld [vmem:[#allocation5 + $0x38] sm:$0xf]
    %v161 = vld [vmem:[#allocation5 + $0x3c] sm:$0xf]
    %v162 = vld [vmem:[%s4] sm:$0x1]
    %v164 = vlaneseq
    %v165 = vshrl.u32 %v164, 7
    %v166 = vsub.s32 0, %v165
    %v167 = vrot.slane %v162, %v166
    %v185 = vunpack.c.l.b16 %v146
    %v186 = vunpack.c.l.b16 %v147
    %v187 = vunpack.c.l.b16 %v148
    %v188 = vunpack.c.l.b16 %v149
    %v189 = vunpack.c.l.b16 %v150
    %v190 = vunpack.c.l.b16 %v151
    %v191 = vunpack.c.l.b16 %v152
    %v192 = vunpack.c.l.b16 %v153
    %v193 = vunpack.c.l.b16 %v154
    %v194 = vunpack.c.l.b16 %v155
    %v195 = vunpack.c.l.b16 %v156
    %v196 = vunpack.c.l.b16 %v157
    %v197 = vunpack.c.l.b16 %v158
    %v198 = vunpack.c.l.b16 %v159
    %v199 = vunpack.c.l.b16 %v160
    %v200 = vunpack.c.l.b16 %v161
    %v201 = vpack.c.b16 %v186, %v185
    %v202 = vpack.c.b16 %v188, %v187
    %v203 = vpack.c.b16 %v190, %v189
    %v204 = vpack.c.b16 %v192, %v191
    %v205 = vpack.c.b16 %v194, %v193
    %v206 = vpack.c.b16 %v196, %v195
    %v207 = vpack.c.b16 %v198, %v197
    %v208 = vpack.c.b16 %v200, %v199
    %217 = vmatprep.subr.bf16.mxu0 0
    %218 = vmatpush1.bf16.msra.mxu0 %v201
    %219 = vmatprep.subr.bf16.mxu0 0
    %220 = vmatpush1.bf16.msra.mxu0 %v202
    %221 = vmatprep.subr.bf16.mxu0 0
    %222 = vmatpush1.bf16.msra.mxu0 %v203
    %223 = vmatprep.subr.bf16.mxu0 0
    %224 = vmatpush1.bf16.msra.mxu0 %v204
    %225 = vmatprep.subr.bf16.mxu0 0
    %226 = vmatpush1.bf16.msra.mxu0 %v205
    %227 = vmatprep.subr.bf16.mxu0 0
    %228 = vmatpush1.bf16.msra.mxu0 %v206
    %229 = vmatprep.subr.bf16.mxu0 0
    %230 = vmatpush1.bf16.msra.mxu0 %v207
    %231 = vmatprep.subr.bf16.mxu0 0
    %232 = vmatpush1.bf16.msra.mxu0 %v208
    %233 = vmatprep.subr.bf16.mxu0 0
    %234 = vmatpush1.bf16.msra.mxu0 0
    %235 = vmatprep.subr.bf16.mxu0 0
    %236 = vmatpush1.bf16.msra.mxu0 0
    %237 = vmatprep.subr.bf16.mxu0 0
    %238 = vmatpush1.bf16.msra.mxu0 0
    %239 = vmatprep.subr.bf16.mxu0 0
    %240 = vmatpush1.bf16.msra.mxu0 0
    %241 = vmatprep.subr.bf16.mxu0 0
    %242 = vmatpush1.bf16.msra.mxu0 0
    %243 = vmatprep.subr.bf16.mxu0 0
    %244 = vmatpush1.bf16.msra.mxu0 0
    %245 = vmatprep.subr.bf16.mxu0 0
    %246 = vmatpush1.bf16.msra.mxu0 0
    %247 = vmatprep.subr.bf16.mxu0 0
    %248 = vmatpush1.bf16.msra.mxu0 0
    %249 = vmatprep.mubr.bf16.mxu0 0
    %250 = vmatmul.mubr.bf16.gmra.mrb[0].mxu0 %v145
    %v251 = vpop.f32.mrb[0].mxu0
    %v252 = vadd.f32 %v167, %v251
    %v253 = vpop.f32.mrb[0].mxu0
    %v254 = vpop.f32.mrb[0].mxu0
    %v255 = vpop.f32.mrb[0].mxu0
    %256 = vdwg.mxu0
    %257 = vst [vmem:[#allocation7] sm:$0x3] %v252
    // Predicated region
    $region30: #{tpu_custom_call.1} parent=1 // pred_check
      _
    $region31: #{tpu_custom_call.1} parent=1 // pred_check_branch
      %259 = sbr.rel (0) target = $region33
    $region32: #{tpu_custom_call.1} parent=1 // pred_region
      %s261 = ssub.s32 32, 32
      %262 = vsyncadd [#allocation4], %s261
      %s264 = sshll.u32 [#allocation7], 4
      %s265 = int_to_ptr.vmem [resolvable:$true] %s264
      %267 = dma.vmem_to_hbm [thread:$0]  %s265, 32, %s5, [#allocation4]
    $region33: #{tpu_custom_call.1} parent=1 // pred_fallthru
      _
    // Predicated region
    $region34: #{tpu_custom_call.1} parent=1 // pred_check
      _
    $region35: #{tpu_custom_call.1} parent=1 // pred_check_branch
      %269 = sbr.rel (0) target = $region37
    $region36: #{tpu_custom_call.1} parent=1 // pred_region
      %270 = dma.done [#allocation4], 32
    $region37: #{tpu_custom_call.1} parent=1 // pred_fallthru
      _
    %271 = vsyncpa [#allocation3], 1
    %272 = vsyncpa [#allocation6], 1
    %273 = vsyncpa [#allocation4], 1

</llo_original>
